<compile_context>
chip_gen: v5e
topology: v5e:2x2
jax: 0.10.0
libtpu: 0.0.40
codegen_flags: <defaults>
</compile_context>

<pallas_src>
import math

import jax
import jax.numpy as jnp
from jax.experimental import pallas as pl
from jax.experimental.pallas import tpu as pltpu


def _round_up(x, m):
    return (x + m - 1) // m * m


# ---------------------------------------------------------------------------
# Stage A: per-triple features + attention logits (n0-independent, hoisted)
# ---------------------------------------------------------------------------
def _make_triple_kernel(hd, num_heads, ha_pad, tile_t):
    ha = hd + num_heads

    def kernel(tf_ref, w_ref, out_ref):
        # ONE bf16 MXU matmul: triple_fc for all heads + per-head attention
        # logits (block-diagonal attention weights pre-folded into w_ref).
        y = jnp.dot(tf_ref[...], w_ref[...],
                    preferred_element_type=jnp.float32)        # (tile_t, ha_pad)
        h_all = y[:, :hd]                                      # (tile_t, H*D)
        logits = y[:, hd:ha]                                   # (tile_t, H)
        att = logits * jnp.tanh(jnp.logaddexp(logits, 0.0))    # mish on (t, H) only
        pieces = [h_all, att]
        if ha_pad > ha:
            pieces.append(jnp.zeros((tile_t, ha_pad - ha), jnp.float32))
        out_ref[...] = jnp.concatenate(pieces, axis=-1).astype(out_ref.dtype)

    return kernel


# ---------------------------------------------------------------------------
# Stage B: factored flash-style segment softmax + weighted segment sum
# ---------------------------------------------------------------------------
def _make_segment_kernel(hd, num_heads, d_head, tile_n0, tile_t, out_pad):
    def kernel(ha_ref, rows_ref, out_ref, m_scr, l_scr, acc_scr):
        t_idx = pl.program_id(1)
        num_t = pl.num_programs(1)

        # Head-expansion matrix expand[h, h*D + d] = 1 (tiny, rebuilt per step;
        # used to broadcast per-head scalars across each head's D lanes via a
        # small, always-lowerable matmul instead of a 3D reshape).
        col_head = jax.lax.broadcasted_iota(jnp.int32, (num_heads, hd), 1) // d_head
        row_head = jax.lax.broadcasted_iota(jnp.int32, (num_heads, hd), 0)
        expand = (col_head == row_head).astype(jnp.float32)          # (H, H*D)

        @pl.when(t_idx == 0)
        def _init():
            m_scr[...] = jnp.full_like(m_scr, -1e30)
            l_scr[...] = jnp.zeros_like(l_scr)
            acc_scr[...] = jnp.zeros_like(acc_scr)

        ha = ha_ref[...]                                             # (tile_t, ha_pad) bf16
        h_all = ha[:, :hd].astype(jnp.float32)                       # (tile_t, H*D)
        att = ha[:, hd:hd + num_heads].astype(jnp.float32)           # (tile_t, H)

        # ---- factored online softmax: exp only over (tile_t, H) ----
        m_tile = jnp.max(att, axis=0, keepdims=True)                 # (1, H)
        m_old = m_scr[...]                                           # (8, H), rows identical
        m_new = jnp.maximum(m_old, m_tile)                           # (8, H)
        alpha = jnp.exp(m_old - m_new)                               # (8, H)
        p = jnp.exp(att - m_new[0:1])                                # (tile_t, H), <= 1

        # Per-head scaling of h_all: p_b[t, h*D+d] = p[t, h].
        p_b = jnp.dot(p, expand, preferred_element_type=jnp.float32)  # (tile_t, H*D)
        rhs = jnp.concatenate([h_all * p_b, p], axis=-1)              # (tile_t, H*D+H)
        rhs = rhs.astype(jnp.bfloat16)

        # Segment-membership mask from int32 row ids (no dense one-hot in HBM).
        row_base = pl.program_id(0) * tile_n0
        row_ids = row_base + jax.lax.broadcasted_iota(
            jnp.int32, (tile_n0, tile_t), 0)
        maskb = (row_ids == rows_ref[...]).astype(jnp.bfloat16)       # (tile_n0, tile_t)

        # ONE fused bf16 MXU matmul: all heads' weighted sums + denominators.
        contrib = jnp.dot(maskb, rhs,
                          preferred_element_type=jnp.float32)         # (tile_n0, H*D+H)

        alpha_b = jnp.dot(alpha, expand,
                          preferred_element_type=jnp.float32)          # (8, H*D)
        acc_scr[...] = acc_scr[...] * alpha_b[0:1] + contrib[:, :hd]
        l_scr[...] = l_scr[...] * alpha[0:1] + contrib[:, hd:]
        m_scr[...] = m_new

        @pl.when(t_idx == num_t - 1)
        def _finalize():
            l = l_scr[...]                                            # (tile_n0, H)
            l_safe = jnp.where(l > 0.0, l, 1.0)
            inv = jnp.where(l > 0.0, 1.0 / l_safe, 0.0)               # empty segment -> 0
            inv_b = jnp.dot(inv, expand, preferred_element_type=jnp.float32)
            out = acc_scr[...] * inv_b                                # (tile_n0, H*D)
            if out_pad > hd:
                out = jnp.concatenate(
                    [out, jnp.zeros((tile_n0, out_pad - hd), jnp.float32)], axis=-1)
            out_ref[...] = out                                        # lane-dense store

    return kernel


# ---------------------------------------------------------------------------
# Wrapper: all heads of one KBGraphAttentionalLayer in two pallas_calls
# ---------------------------------------------------------------------------
def gat_all_heads(triple_features, rows, w_all, a_vec, n0, *,
                  block_n0=512, block_t=1024):
    """All attention heads of one KBGraphAttentionalLayer.

    triple_features : (T, F) float32
    rows            : (T,)   int32  adjacency row (entity) id per triple
    w_all           : (F, H*D)      fused triple_fc weight (head-major columns)
    a_vec           : (H, D)        per-head attention vectors
    returns         : (n0, H*D) float32, heads concatenated along features
    """
    t, f = triple_features.shape
    num_heads, d_head = a_vec.shape
    hd = num_heads * d_head
    ha = hd + num_heads
    ha_pad = _round_up(ha, 128)          # lane-dense intermediate width
    out_pad = _round_up(hd, 128)         # lane-dense output width

    tile_t = min(block_t, _round_up(t, 128))
    t_pad = _round_up(t, tile_t)
    tile_n0 = min(block_n0, _round_up(n0, 8))
    n0_pad = _round_up(n0, tile_n0)

    # Fused weight [W_all | W_all@a (per-head logits) | 0]: the block-diagonal
    # attention matmul never materializes; logits come out of the same matmul.
    w_att = jnp.einsum("fhd,hd->fh",
                       w_all.reshape(f, num_heads, d_head), a_vec)    # (F, H)
    w_parts = [w_all, w_att]
    if ha_pad > ha:
        w_parts.append(jnp.zeros((f, ha_pad - ha), w_all.dtype))
    w_fused = jnp.concatenate(w_parts, axis=-1).astype(jnp.bfloat16)  # (F, ha_pad)

    tf_p = jnp.pad(triple_features, ((0, t_pad - t), (0, 0))).astype(jnp.bfloat16)
    rows_p = jnp.pad(rows.astype(jnp.int32), (0, t_pad - t),
                     constant_values=-1).reshape(1, t_pad)   # -1 never matches

    # ---- stage A: per-triple features + attention logits (streamed once) ----
    h_att = pl.pallas_call(
        _make_triple_kernel(hd, num_heads, ha_pad, tile_t),
        out_shape=jax.ShapeDtypeStruct((t_pad, ha_pad), jnp.bfloat16),
        grid_spec=pltpu.PrefetchScalarGridSpec(
            num_scalar_prefetch=0,
            grid=(t_pad // tile_t,),
            in_specs=[pl.BlockSpec((tile_t, f), lambda k: (k, 0)),
                      pl.BlockSpec((f, ha_pad), lambda k: (0, 0))],
            out_specs=pl.BlockSpec((tile_t, ha_pad), lambda k: (k, 0)),
        ),
        compiler_params=pltpu.CompilerParams(
            dimension_semantics=("parallel",)),
    )(tf_p, w_fused)

    # ---- stage B: segment softmax + weighted segment sum ----
    # VMEM budget from the real per-step working set (double-buffered inputs,
    # resident output block, scratch, in-kernel mask / rhs temps) + headroom;
    # capped at the 32 MiB default scoped limit (fits v7x's 64 MiB physical).
    work_bytes = (2 * tile_t * ha_pad * 2            # h/att tiles (bf16, 2 bufs)
                  + 2 * tile_t * 4                   # row-id tiles (int32, 2 bufs)
                  + 2 * tile_n0 * out_pad * 4        # output block
                  + tile_n0 * (hd + num_heads) * 4   # acc + denom scratch
                  + tile_n0 * tile_t * 2             # mask matmul operand
                  + 2 * tile_t * ha_pad * 4)         # rhs / p_b temps
    vmem_limit = int(min(max(3 * work_bytes, 16 << 20), 32 << 20))

    out = pl.pallas_call(
        _make_segment_kernel(hd, num_heads, d_head, tile_n0, tile_t, out_pad),
        out_shape=jax.ShapeDtypeStruct((n0_pad, out_pad), jnp.float32),
        grid_spec=pltpu.PrefetchScalarGridSpec(
            num_scalar_prefetch=0,
            grid=(n0_pad // tile_n0, t_pad // tile_t),
            in_specs=[pl.BlockSpec((tile_t, ha_pad), lambda n, k: (k, 0)),
                      pl.BlockSpec((1, tile_t), lambda n, k: (0, k))],
            out_specs=pl.BlockSpec((tile_n0, out_pad), lambda n, k: (n, 0)),
            scratch_shapes=[
                pltpu.VMEM((8, num_heads), jnp.float32),        # running max
                pltpu.VMEM((tile_n0, num_heads), jnp.float32),  # running denom
                pltpu.VMEM((tile_n0, hd), jnp.float32),         # running acc
            ],
        ),
        compiler_params=pltpu.CompilerParams(
            dimension_semantics=("parallel", "arbitrary"),
            vmem_limit_bytes=vmem_limit,
        ),
    )(h_att, rows_p)
    # TODO(synk): for very large graphs, sort triples by row and use
    # PrefetchScalarGridSpec row-offset prefetch so each n0 tile streams only
    # its own t-range instead of the dense (tile_n0, tile_t) mask matmul.
    return out[:n0, :hd]


# ---------------------------------------------------------------------------
# Pure-JAX reference for the fused GAT kernels (used for a self-check)
# ---------------------------------------------------------------------------
def gat_reference(triple_features, rows, w_all, a_vec, n0):
    # NB: NaN for entities with no incident triples (kernel outputs 0 there);
    # the self-check constructs data where every entity has at least one triple.
    h_all = triple_features @ w_all                                  # (T, H*D)
    num_heads, d = a_vec.shape
    logits = jnp.einsum("thd,hd->th",
                        h_all.reshape(-1, num_heads, d), a_vec)      # (T, H)
    att = logits * jnp.tanh(jax.nn.softplus(logits))                 # mish
    seg_max = jax.ops.segment_max(att, rows, num_segments=n0)
    p = jnp.exp(att - seg_max[rows])
    denom = jax.ops.segment_sum(p, rows, num_segments=n0)
    w = p / denom[rows]                                              # (T, H)
    weighted = h_all * jnp.repeat(w, d, axis=1)                      # (T, H*D)
    return jax.ops.segment_sum(weighted, rows, num_segments=n0)      # (n0, H*D)


# ---------------------------------------------------------------------------
# Layer / network glue (plain JAX)
# ---------------------------------------------------------------------------
def mish(x):
    return x * jnp.tanh(jax.nn.softplus(x))


def layer_norm(x, weight, bias, eps=1e-5):
    mu = jnp.mean(x, axis=-1, keepdims=True)
    var = jnp.mean(jnp.square(x - mu), axis=-1, keepdims=True)
    return (x - mu) * jax.lax.rsqrt(var + eps) * weight + bias


def kb_graph_attentional_layer(entity_features, relation_features, triple_list,
                               rows, layer_params, n0, concatenate=True):
    """KBGraphAttentionalLayer forward (eval mode).

    TODO(synk): dropout layers are eval-mode identities; duplicate (row, slot)
    adjacency indices are assumed absent (torch coalesce would sum them).
    """
    head_f = jnp.take(entity_features, triple_list[:, 0], axis=0)
    tail_f = jnp.take(entity_features, triple_list[:, 1], axis=0)
    edge_f = jnp.take(relation_features, triple_list[:, 2], axis=0)
    triple_features = jnp.concatenate([head_f, tail_f, edge_f], axis=-1)

    ent_out = gat_all_heads(triple_features, rows,
                            layer_params["W_all"], layer_params["A_vec"], n0)
    if not concatenate:
        num_heads = layer_params["A_vec"].shape[0]
        ent_out = ent_out.reshape(n0, num_heads, -1).mean(axis=1)

    # Tiny (N_rel, E) @ (E, E) matmul: not worth a pallas_call's fixed cost.
    rel_out = relation_features @ layer_params["W_rel"].T
    return ent_out, rel_out


def kb_graph_attention_network(params, entity_ids, relation_ids, triple_list,
                               adj_indices, *, n0):
    """Full KBGraphAttentionNetwork forward (eval mode / no dropout)."""
    ent = params["entity_embeddings"][entity_ids]
    rel = params["relation_embeddings"][relation_ids]
    rows = adj_indices[0].astype(jnp.int32)

    ent, rel = kb_graph_attentional_layer(ent, rel, triple_list, rows,
                                          params["layer_1"], n0,
                                          concatenate=True)
    ent = mish(layer_norm(ent, params["ent_ln_1_w"], params["ent_ln_1_b"]))
    rel = mish(layer_norm(rel, params["rel_ln_1_w"], params["rel_ln_1_b"]))

    ent, rel = kb_graph_attentional_layer(ent, rel, triple_list, rows,
                                          params["layer_2"], n0,
                                          concatenate=False)
    ent = mish(layer_norm(ent, params["ent_ln_2_w"], params["ent_ln_2_b"]))
    rel = mish(layer_norm(rel, params["rel_ln_2_w"], params["rel_ln_2_b"]))

    ent = ent @ params["entity_fc_w"].T + params["entity_fc_b"]
    rel = rel @ params["relation_fc_w"].T + params["relation_fc_b"]
    return ent, rel


# ---------------------------------------------------------------------------
# Parameter init (matching the PyTorch init distributions)
# ---------------------------------------------------------------------------
def init_layer_params(key, num_heads, d_in, d_out_total, d_rel, concatenate=True):
    d_out = d_out_total // num_heads if concatenate else d_out_total
    f_in = 2 * d_in + d_rel
    k_t, k_a, k_r = jax.random.split(key, 3)

    # triple_fc.weight (d_out, F): kaiming_uniform_, 'linear' -> sqrt(3/fan_in)
    b_t = math.sqrt(3.0 / f_in)
    w_triple = jax.random.uniform(k_t, (num_heads, d_out, f_in),
                                  minval=-b_t, maxval=b_t, dtype=jnp.float32)
    # attention_fc.weight (1, d_out): kaiming_uniform_, 'relu' -> sqrt(6/fan_in)
    b_a = math.sqrt(6.0 / d_out)
    w_att = jax.random.uniform(k_a, (num_heads, 1, d_out),
                               minval=-b_a, maxval=b_a, dtype=jnp.float32)
    # relation_fc.weight (d_rel, d_rel): kaiming_uniform_, 'relu'
    b_r = math.sqrt(6.0 / d_rel)
    w_rel = jax.random.uniform(k_r, (d_rel, d_rel),
                               minval=-b_r, maxval=b_r, dtype=jnp.float32)

    # Fused layouts for the Pallas kernels:
    #   W_all[f, h*D + d] = w_triple[h, d, f]   (head-major columns)
    w_all = jnp.transpose(w_triple, (2, 0, 1)).reshape(f_in, num_heads * d_out)
    a_vec = w_att[:, 0, :]                                   # (H, D)
    return {"W_all": w_all, "A_vec": a_vec, "W_rel": w_rel}


def init_network_params(key, num_entities, num_relations, embedding_size,
                        num_heads):
    e = embedding_size
    k_ent, k_rel, k_l1, k_l2, k_efc, k_rfc = jax.random.split(key, 6)

    b_e = math.sqrt(6.0 / num_entities)
    ent_emb = jax.random.uniform(k_ent, (num_entities, e),
                                 minval=-b_e, maxval=b_e, dtype=jnp.float32)
    b_r = math.sqrt(6.0 / num_relations)
    rel_emb = jax.random.uniform(k_rel, (num_relations, e),
                                 minval=-b_r, maxval=b_r, dtype=jnp.float32)
    rel_emb = rel_emb / jnp.linalg.norm(rel_emb, axis=-1, keepdims=True)

    b_fc = math.sqrt(3.0 / e)   # kaiming_uniform_, 'linear'
    entity_fc_w = jax.random.uniform(k_efc, (e, e), minval=-b_fc, maxval=b_fc,
                                     dtype=jnp.float32)
    relation_fc_w = jax.random.uniform(k_rfc, (e, e), minval=-b_fc, maxval=b_fc,
                                       dtype=jnp.float32)

    ones = jnp.ones((e,), jnp.float32)
    zeros = jnp.zeros((e,), jnp.float32)
    return {
        "entity_embeddings": ent_emb,
        "relation_embeddings": rel_emb,
        "layer_1": init_layer_params(k_l1, num_heads, e, e, e, concatenate=True),
        "layer_2": init_layer_params(k_l2, num_heads, e, e, e, concatenate=False),
        "ent_ln_1_w": ones, "ent_ln_1_b": zeros,
        "rel_ln_1_w": ones, "rel_ln_1_b": zeros,
        "ent_ln_2_w": ones, "ent_ln_2_b": zeros,
        "rel_ln_2_w": ones, "rel_ln_2_b": zeros,
        "entity_fc_w": entity_fc_w, "entity_fc_b": zeros,
        "relation_fc_w": relation_fc_w, "relation_fc_b": zeros,
    }


# ---------------------------------------------------------------------------
if __name__ == "__main__":
    key = jax.random.PRNGKey(0)
    k_params, k_tail, k_relid, k_extra = jax.random.split(key, 4)

    num_entities = 64
    num_relations = 8
    embedding_size = 64
    num_heads = 4
    num_triples = 160

    params = init_network_params(k_params, num_entities, num_relations,
                                 embedding_size, num_heads)

    # Triples: every entity appears at least once as a head so the adjacency's
    # inferred dense size (max row + 1) equals num_entities (static n0).
    extra_heads = jax.random.randint(k_extra, (num_triples - num_entities,),
                                     0, num_entities)
    heads_ids = jnp.concatenate([jnp.arange(num_entities),
                                 extra_heads]).astype(jnp.int32)
    tails_ids = jax.random.randint(k_tail, (num_triples,), 0,
                                   num_entities).astype(jnp.int32)
    rel_ids = jax.random.randint(k_relid, (num_triples,), 0,
                                 num_relations).astype(jnp.int32)
    triple_list = jnp.stack([heads_ids, tails_ids, rel_ids], axis=-1)
    adj_indices = jnp.stack(
        [heads_ids, jnp.arange(num_triples, dtype=jnp.int32)], axis=0)

    entity_ids = jnp.arange(num_entities, dtype=jnp.int32)
    relation_ids = jnp.arange(num_relations, dtype=jnp.int32)

    # --- self-check: fused Pallas GAT kernels vs pure-JAX segment reference ---
    ent_emb = params["entity_embeddings"][entity_ids]
    rel_emb = params["relation_embeddings"][relation_ids]
    tf_check = jnp.concatenate([ent_emb[heads_ids], ent_emb[tails_ids],
                                rel_emb[rel_ids]], axis=-1)
    rows_check = adj_indices[0]
    got = gat_all_heads(tf_check, rows_check, params["layer_1"]["W_all"],
                        params["layer_1"]["A_vec"], num_entities)
    want = gat_reference(tf_check, rows_check, params["layer_1"]["W_all"],
                         params["layer_1"]["A_vec"], num_entities)
    err = float(jnp.max(jnp.abs(got - want)))
    # bf16 MXU operands + bf16 stage-A intermediate bound the error well below
    # this tolerance at these magnitudes (|out| ~ 0.5, worst-case err ~1e-2).
    if not (err < 2.5e-2):
        raise SystemExit(f"Pallas GAT kernel mismatch: max abs err = {err}")

    # --- full network forward ---
    fwd = jax.jit(kb_graph_attention_network, static_argnames=("n0",))
    entity_out, relation_out = fwd(params, entity_ids, relation_ids,
                                   triple_list, adj_indices, n0=num_entities)
    jax.block_until_ready(entity_out)
    jax.block_until_ready(relation_out)
    print("KERNEL_OK")
</pallas_src>

<mosaic_0001>
module attributes {stable_mosaic.version = 11 : i64} {
  func.func @kernel(%arg0: i32, %arg1: memref<256x192xbf16, #tpu.memory_space<vmem>>, %arg2: memref<192x128xbf16, #tpu.memory_space<vmem>>, %arg3: memref<256x128xbf16, #tpu.memory_space<vmem>>) attributes {dimension_semantics = [#tpu.dimension_semantics<parallel>], iteration_bounds = array<i64: 1>, scalar_prefetch = 0 : i64, scratch_operands = 0 : i64, tpu.core_type = #tpu.core_type<tc>, window_params = [{transform_indices = @transform_0, window_bounds = array<i64: 256, 192>}, {pipeline_mode = #tpu.pipeline_mode<synchronous>, transform_indices = @transform_1, window_bounds = array<i64: 192, 128>}, {transform_indices = @transform_2, window_bounds = array<i64: 256, 128>}]} {
    %c0 = arith.constant 0 : index
    %c0_0 = arith.constant 0 : index
    %0 = vector.load %arg1[%c0, %c0_0] : memref<256x192xbf16, #tpu.memory_space<vmem>>, vector<256x192xbf16>
    %c0_1 = arith.constant 0 : index
    %c0_2 = arith.constant 0 : index
    %1 = vector.load %arg2[%c0_1, %c0_2] : memref<192x128xbf16, #tpu.memory_space<vmem>>, vector<192x128xbf16>
    %cst = arith.constant dense<0.000000e+00> : vector<256x128xf32>
    %2 = tpu.matmul %0, %1, %cst {dimension_numbers = #tpu.dot_dimension_numbers<[1], [0], [0], [1], [0, 0, 1, 1], [], []>} : vector<256x192xbf16>, vector<192x128xbf16>, vector<256x128xf32> -> vector<256x128xf32>
    %3 = vector.extract_strided_slice %2 {offsets = [0, 0], sizes = [256, 64], strides = [1, 1]} : vector<256x128xf32> to vector<256x64xf32>
    %4 = vector.extract_strided_slice %2 {offsets = [0, 64], sizes = [256, 4], strides = [1, 1]} : vector<256x128xf32> to vector<256x4xf32>
    %cst_3 = arith.constant 0.000000e+00 : f32
    %5 = vector.broadcast %cst_3 : f32 to vector<256x4xf32>
    %6 = arith.maximumf %4, %5 : vector<256x4xf32>
    %7 = vector.broadcast %cst_3 : f32 to vector<256x4xf32>
    %8 = arith.subf %4, %7 : vector<256x4xf32>
    %9 = arith.cmpf one, %8, %8 : vector<256x4xf32>
    %10 = vector.broadcast %cst_3 : f32 to vector<256x4xf32>
    %11 = arith.addf %4, %10 : vector<256x4xf32>
    %12 = math.absf %8 : vector<256x4xf32>
    %cst_4 = arith.constant 0.000000e+00 : f32
    %13 = vector.broadcast %cst_4 : f32 to vector<256x4xf32>
    %14 = arith.subf %13, %12 : vector<256x4xf32>
    %15 = math.exp %14 : vector<256x4xf32>
    %16 = math.log1p %15 : vector<256x4xf32>
    %17 = arith.addf %6, %16 : vector<256x4xf32>
    %18 = arith.select %9, %11, %17 : vector<256x4xi1>, vector<256x4xf32>
    %19 = math.tanh %18 : vector<256x4xf32>
    %20 = arith.mulf %4, %19 : vector<256x4xf32>
    %cst_5 = arith.constant 0.000000e+00 : f32
    %21 = vector.broadcast %cst_5 : f32 to vector<256x60xf32>
    %22 = tpu.concatenate %3, %20, %21 in 1 : vector<256x64xf32>, vector<256x4xf32>, vector<256x60xf32> -> vector<256x128xf32>
    %23 = arith.truncf %22 : vector<256x128xf32> to vector<256x128xbf16>
    %c0_6 = arith.constant 0 : index
    %c0_7 = arith.constant 0 : index
    %24 = vector.load %arg3[%c0_6, %c0_7] : memref<256x128xbf16, #tpu.memory_space<vmem>>, vector<256x128xbf16>
    tpu.vector_store %arg3[%c0_6, %c0_7], %23 {strides = array<i32>} : memref<256x128xbf16, #tpu.memory_space<vmem>>, vector<256x128xbf16>,
    return
  }
  func.func @transform_0(%arg0: i32) -> (i32, i32) {
    %c0_i32 = arith.constant 0 : i32
    %c0_i32_0 = arith.constant 0 : i32
    return %arg0, %c0_i32 : i32, i32
  }
  func.func @transform_1(%arg0: i32) -> (i32, i32) {
    %c0_i32 = arith.constant 0 : i32
    %c0_i32_0 = arith.constant 0 : i32
    %c0_i32_1 = arith.constant 0 : i32
    return %c0_i32, %c0_i32_0 : i32, i32
  }
  func.func @transform_2(%arg0: i32) -> (i32, i32) {
    %c0_i32 = arith.constant 0 : i32
    %c0_i32_0 = arith.constant 0 : i32
    return %arg0, %c0_i32 : i32, i32
  }
}

</mosaic_0001>

<llo_original>
// kernel: tpu_custom_call.1
$region0: #{tpu_custom_call.1}
  #allocation0 [shape = 'u32[]', space=smem, size = 0x4, offset = 0x4, fixed_abs, tag = 'smem constant byte address 0x4 - core index']
  #allocation1 [shape = 'u32[72,128]{1,0:T(1,128)}', space=vmem, size = 0x9000, scoped, tag = 'internal scratch']
  %s0 = inlined_call_operand.vmem [shape: bf16[256,192], index: 0, kind: input, shape index: {}]
  %s1 = inlined_call_operand.vmem [shape: bf16[192,128], index: 1, kind: input, shape index: {}]
  %s2 = inlined_call_operand.hbm [shape: bf16[256,128], index: 2, kind: output, shape index: {}]
  %s3 = sld [smem:[#allocation0]]
  $region18: #{tpu_custom_call.1} parent=0
    _
  %s5 = ssub.s32 1, %s3
  %s6 = scalar_select 0, %s5, %s3
  $region1: #{tpu_custom_call.1} parent=0
    #allocation2 [shape = 'u8[65536]{0}', space=vmem, size = 0x10000, scoped, tag = 'output window, operand 0, single buffered']
    #allocation3 [shape = 's32[1]{0}', space=sflag, size = 0x4, scoped, tag = 'scoped memory for tpu_custom_call.1']
    %7 = vsyncpa [#allocation3], 0
    // Predicated region
    $region2: #{tpu_custom_call.1} parent=1 // pred_check
      _
    $region3: #{tpu_custom_call.1} parent=1 // pred_check_branch
      %9 = sbr.rel (0) target = $region5
    $region4: #{tpu_custom_call.1} parent=1 // pred_region
      _
    $region5: #{tpu_custom_call.1} parent=1 // pred_fallthru
      _
    // Predicated region
    $region6: #{tpu_custom_call.1} parent=1 // pred_check
      _
    $region7: #{tpu_custom_call.1} parent=1 // pred_check_branch
      %11 = sbr.rel (0) target = $region9
    $region8: #{tpu_custom_call.1} parent=1 // pred_region
      _
    $region9: #{tpu_custom_call.1} parent=1 // pred_fallthru
      _
    %v13 = vld [vmem:[%s0] sm:$0xff]
    %v14 = vld [vmem:[%s0 + $0x8] sm:$0xff]
    %v15 = vld [vmem:[%s0 + $0x10] sm:$0xff]
    %v16 = vld [vmem:[%s0 + $0x18] sm:$0xff]
    %v17 = vld [vmem:[%s0 + $0x20] sm:$0xff]
    %v18 = vld [vmem:[%s0 + $0x28] sm:$0xff]
    %v19 = vld [vmem:[%s0 + $0x30] sm:$0xff]
    %v20 = vld [vmem:[%s0 + $0x38] sm:$0xff]
    %v21 = vld [vmem:[%s0 + $0x40] sm:$0xff]
    %v22 = vld [vmem:[%s0 + $0x48] sm:$0xff]
    %v23 = vld [vmem:[%s0 + $0x50] sm:$0xff]
    %v24 = vld [vmem:[%s0 + $0x58] sm:$0xff]
    %v25 = vld [vmem:[%s0 + $0x60] sm:$0xff]
    %v26 = vld [vmem:[%s0 + $0x68] sm:$0xff]
    %v27 = vld [vmem:[%s0 + $0x70] sm:$0xff]
    %v28 = vld [vmem:[%s0 + $0x78] sm:$0xff]
    %v29 = vld [vmem:[%s0 + $0x80] sm:$0xff]
    %v30 = vld [vmem:[%s0 + $0x88] sm:$0xff]
    %v31 = vld [vmem:[%s0 + $0x90] sm:$0xff]
    %v32 = vld [vmem:[%s0 + $0x98] sm:$0xff]
    %v33 = vld [vmem:[%s0 + $0xa0] sm:$0xff]
    %v34 = vld [vmem:[%s0 + $0xa8] sm:$0xff]
    %v35 = vld [vmem:[%s0 + $0xb0] sm:$0xff]
    %v36 = vld [vmem:[%s0 + $0xb8] sm:$0xff]
    %v37 = vld [vmem:[%s0 + $0xc0] sm:$0xff]
    %v38 = vld [vmem:[%s0 + $0xc8] sm:$0xff]
    %v39 = vld [vmem:[%s0 + $0xd0] sm:$0xff]
    %v40 = vld [vmem:[%s0 + $0xd8] sm:$0xff]
    %v41 = vld [vmem:[%s0 + $0xe0] sm:$0xff]
    %v42 = vld [vmem:[%s0 + $0xe8] sm:$0xff]
    %v43 = vld [vmem:[%s0 + $0xf0] sm:$0xff]
    %v44 = vld [vmem:[%s0 + $0xf8] sm:$0xff]
    %v45 = vld [vmem:[%s1] sm:$0xf]
    %v46 = vld [vmem:[%s1 + $0x4] sm:$0xf]
    %v47 = vld [vmem:[%s1 + $0x8] sm:$0xf]
    %v48 = vld [vmem:[%s1 + $0xc] sm:$0xf]
    %v49 = vld [vmem:[%s1 + $0x10] sm:$0xf]
    %v50 = vld [vmem:[%s1 + $0x14] sm:$0xf]
    %v51 = vld [vmem:[%s1 + $0x18] sm:$0xf]
    %v52 = vld [vmem:[%s1 + $0x1c] sm:$0xf]
    %v53 = vld [vmem:[%s1 + $0x20] sm:$0xf]
    %v54 = vld [vmem:[%s1 + $0x24] sm:$0xf]
    %v55 = vld [vmem:[%s1 + $0x28] sm:$0xf]
    %v56 = vld [vmem:[%s1 + $0x2c] sm:$0xf]
    %v57 = vld [vmem:[%s1 + $0x30] sm:$0xf]
    %v58 = vld [vmem:[%s1 + $0x34] sm:$0xf]
    %v59 = vld [vmem:[%s1 + $0x38] sm:$0xf]
    %v60 = vld [vmem:[%s1 + $0x3c] sm:$0xf]
    %v61 = vld [vmem:[%s1 + $0x40] sm:$0xf]
    %v62 = vld [vmem:[%s1 + $0x44] sm:$0xf]
    %v63 = vld [vmem:[%s1 + $0x48] sm:$0xf]
    %v64 = vld [vmem:[%s1 + $0x4c] sm:$0xf]
    %v65 = vld [vmem:[%s1 + $0x50] sm:$0xf]
    %v66 = vld [vmem:[%s1 + $0x54] sm:$0xf]
    %v67 = vld [vmem:[%s1 + $0x58] sm:$0xf]
    %v68 = vld [vmem:[%s1 + $0x5c] sm:$0xf]
    %v101 = vunpack.c.l.b16 %v13
    %v102 = vunpack.c.h.b16 %v13
    %v103 = vunpack.c.l.b16 %v14
    %v104 = vunpack.c.h.b16 %v14
    %v105 = vunpack.c.l.b16 %v15
    %v106 = vunpack.c.h.b16 %v15
    %v107 = vunpack.c.l.b16 %v16
    %v108 = vunpack.c.h.b16 %v16
    %v109 = vunpack.c.l.b16 %v17
    %v110 = vunpack.c.h.b16 %v17
    %v111 = vunpack.c.l.b16 %v18
    %v112 = vunpack.c.h.b16 %v18
    %v113 = vunpack.c.l.b16 %v19
    %v114 = vunpack.c.h.b16 %v19
    %v115 = vunpack.c.l.b16 %v20
    %v116 = vunpack.c.h.b16 %v20
    %v117 = vunpack.c.l.b16 %v21
    %v118 = vunpack.c.h.b16 %v21
    %v119 = vunpack.c.l.b16 %v22
    %v120 = vunpack.c.h.b16 %v22
    %v121 = vunpack.c.l.b16 %v23
    %v122 = vunpack.c.h.b16 %v23
    %v123 = vunpack.c.l.b16 %v24
    %v124 = vunpack.c.h.b16 %v24
    %v125 = vunpack.c.l.b16 %v25
    %v126 = vunpack.c.h.b16 %v25
    %v127 = vunpack.c.l.b16 %v26
    %v128 = vunpack.c.h.b16 %v26
    %v129 = vunpack.c.l.b16 %v27
    %v130 = vunpack.c.h.b16 %v27
    %v131 = vunpack.c.l.b16 %v28
    %v132 = vunpack.c.h.b16 %v28
    %v133 = vunpack.c.l.b16 %v29
    %v134 = vunpack.c.h.b16 %v29
    %v135 = vunpack.c.l.b16 %v30
    %v136 = vunpack.c.h.b16 %v30
    %v137 = vunpack.c.l.b16 %v31
    %v138 = vunpack.c.h.b16 %v31
    %v139 = vunpack.c.l.b16 %v32
    %v140 = vunpack.c.h.b16 %v32
    %v141 = vunpack.c.l.b16 %v33
    %v142 = vunpack.c.h.b16 %v33
    %v143 = vunpack.c.l.b16 %v34
    %v144 = vunpack.c.h.b16 %v34
    %v145 = vunpack.c.l.b16 %v35
    %v146 = vunpack.c.h.b16 %v35
    %v147 = vunpack.c.l.b16 %v36
    %v148 = vunpack.c.h.b16 %v36
    %v149 = vunpack.c.l.b16 %v37
    %v150 = vunpack.c.h.b16 %v37
    %v151 = vunpack.c.l.b16 %v38
    %v152 = vunpack.c.h.b16 %v38
    %v153 = vunpack.c.l.b16 %v39
    %v154 = vunpack.c.h.b16 %v39
    %v155 = vunpack.c.l.b16 %v40
    %v156 = vunpack.c.h.b16 %v40
    %v157 = vunpack.c.l.b16 %v41
    %v158 = vunpack.c.h.b16 %v41
    %v159 = vunpack.c.l.b16 %v42
    %v160 = vunpack.c.h.b16 %v42
    %v161 = vunpack.c.l.b16 %v43
    %v162 = vunpack.c.h.b16 %v43
    %v163 = vunpack.c.l.b16 %v44
    %v164 = vunpack.c.h.b16 %v44
    %v165 = vpack.c.b16 %v103, %v101
    %v166 = vpack.c.b16 %v104, %v102
    %v167 = vpack.c.b16 %v107, %v105
    %v168 = vpack.c.b16 %v108, %v106
    %v169 = vpack.c.b16 %v111, %v109
    %v170 = vpack.c.b16 %v112, %v110
    %v171 = vpack.c.b16 %v115, %v113
    %v172 = vpack.c.b16 %v116, %v114
    %v173 = vpack.c.b16 %v119, %v117
    %v174 = vpack.c.b16 %v120, %v118
    %v175 = vpack.c.b16 %v123, %v121
    %v176 = vpack.c.b16 %v124, %v122
    %v177 = vpack.c.b16 %v127, %v125
    %v178 = vpack.c.b16 %v128, %v126
    %v179 = vpack.c.b16 %v131, %v129
    %v180 = vpack.c.b16 %v132, %v130
    %v181 = vpack.c.b16 %v135, %v133
    %v182 = vpack.c.b16 %v136, %v134
    %v183 = vpack.c.b16 %v139, %v137
    %v184 = vpack.c.b16 %v140, %v138
    %v185 = vpack.c.b16 %v143, %v141
    %v186 = vpack.c.b16 %v144, %v142
    %v187 = vpack.c.b16 %v147, %v145
    %v188 = vpack.c.b16 %v148, %v146
    %v189 = vpack.c.b16 %v151, %v149
    %v190 = vpack.c.b16 %v152, %v150
    %v191 = vpack.c.b16 %v155, %v153
    %v192 = vpack.c.b16 %v156, %v154
    %v193 = vpack.c.b16 %v159, %v157
    %v194 = vpack.c.b16 %v160, %v158
    %v195 = vpack.c.b16 %v163, %v161
    %v196 = vpack.c.b16 %v164, %v162
    %v237 = vunpack.c.l.b16 %v45
    %v238 = vunpack.c.l.b16 %v46
    %v239 = vunpack.c.l.b16 %v47
    %v240 = vunpack.c.l.b16 %v48
    %v241 = vunpack.c.l.b16 %v49
    %v242 = vunpack.c.l.b16 %v50
    %v243 = vunpack.c.l.b16 %v51
    %v244 = vunpack.c.l.b16 %v52
    %v245 = vunpack.c.l.b16 %v53
    %v246 = vunpack.c.l.b16 %v54
    %v247 = vunpack.c.l.b16 %v55
    %v248 = vunpack.c.l.b16 %v56
    %v249 = vunpack.c.l.b16 %v57
    %v250 = vunpack.c.l.b16 %v58
    %v251 = vunpack.c.l.b16 %v59
    %v252 = vunpack.c.l.b16 %v60
    %v253 = vunpack.c.l.b16 %v61
    %v254 = vunpack.c.l.b16 %v62
    %v255 = vunpack.c.l.b16 %v63
    %v256 = vunpack.c.l.b16 %v64
    %v257 = vunpack.c.l.b16 %v65
    %v258 = vunpack.c.l.b16 %v66
    %v259 = vunpack.c.l.b16 %v67
    %v260 = vunpack.c.l.b16 %v68
    %v261 = vpack.c.b16 %v238, %v237
    %v262 = vpack.c.b16 %v240, %v239
    %v263 = vpack.c.b16 %v242, %v241
    %v264 = vpack.c.b16 %v244, %v243
    %v265 = vpack.c.b16 %v246, %v245
    %v266 = vpack.c.b16 %v248, %v247
    %v267 = vpack.c.b16 %v250, %v249
    %v268 = vpack.c.b16 %v252, %v251
    %v269 = vpack.c.b16 %v254, %v253
    %v270 = vpack.c.b16 %v256, %v255
    %v271 = vpack.c.b16 %v258, %v257
    %v272 = vpack.c.b16 %v260, %v259
    %vm285 = vcmask 523264
    %v287 = vsel %vm285, %v166, 0
    %v290 = vsel %vm285, %v168, 0
    %v293 = vsel %vm285, %v170, 0
    %v296 = vsel %vm285, %v172, 0
    %v299 = vsel %vm285, %v174, 0
    %v302 = vsel %vm285, %v176, 0
    %v305 = vsel %vm285, %v178, 0
    %v308 = vsel %vm285, %v180, 0
    %v311 = vsel %vm285, %v182, 0
    %v314 = vsel %vm285, %v184, 0
    %v317 = vsel %vm285, %v186, 0
    %v320 = vsel %vm285, %v188, 0
    %v323 = vsel %vm285, %v190, 0
    %v326 = vsel %vm285, %v192, 0
    %v329 = vsel %vm285, %v194, 0
    %v332 = vsel %vm285, %v196, 0
    %334 = vmatpush.bf16.msra.mxu0 %v268
    %335 = vmatpush.bf16.msra.mxu0 %v267
    %336 = vmatpush.bf16.msra.mxu0 %v266
    %337 = vmatpush.bf16.msra.mxu0 %v265
    %338 = vmatpush.bf16.msra.mxu0 %v264
    %339 = vmatpush.bf16.msra.mxu0 %v263
    %340 = vmatpush.bf16.msra.mxu0 %v262
    %341 = vmatpush.bf16.msra.mxu0 %v261
    %342 = vmatmul.bf16.gmra.mxu0 %v165
    %v343 = vpop.f32.mrf.mxu0
    %v344 = vadd.f32 0.0, %v343
    %v345 = vpop.f32.mrf.mxu0
    %v346 = vadd.f32 0.0, %v345
    %347 = vmatmul.bf16.gmra.mxu0 %v167
    %v348 = vpop.f32.mrf.mxu0
    %v349 = vadd.f32 0.0, %v348
    %v350 = vpop.f32.mrf.mxu0
    %v351 = vadd.f32 0.0, %v350
    %352 = vmatmul.bf16.gmra.mxu0 %v169
    %v353 = vpop.f32.mrf.mxu0
    %v354 = vadd.f32 0.0, %v353
    %v355 = vpop.f32.mrf.mxu0
    %v356 = vadd.f32 0.0, %v355
    %357 = vmatmul.bf16.gmra.mxu0 %v171
    %v358 = vpop.f32.mrf.mxu0
    %v359 = vadd.f32 0.0, %v358
    %v360 = vpop.f32.mrf.mxu0
    %v361 = vadd.f32 0.0, %v360
    %362 = vmatmul.bf16.gmra.mxu0 %v173
    %v363 = vpop.f32.mrf.mxu0
    %v364 = vadd.f32 0.0, %v363
    %v365 = vpop.f32.mrf.mxu0
    %v366 = vadd.f32 0.0, %v365
    %367 = vmatmul.bf16.gmra.mxu0 %v175
    %v368 = vpop.f32.mrf.mxu0
    %v369 = vadd.f32 0.0, %v368
    %v370 = vpop.f32.mrf.mxu0
    %v371 = vadd.f32 0.0, %v370
    %372 = vmatmul.bf16.gmra.mxu0 %v177
    %v373 = vpop.f32.mrf.mxu0
    %v374 = vadd.f32 0.0, %v373
    %v375 = vpop.f32.mrf.mxu0
    %v376 = vadd.f32 0.0, %v375
    %377 = vmatmul.bf16.gmra.mxu0 %v179
    %v378 = vpop.f32.mrf.mxu0
    %v379 = vadd.f32 0.0, %v378
    %v380 = vpop.f32.mrf.mxu0
    %v381 = vadd.f32 0.0, %v380
    %382 = vmatmul.bf16.gmra.mxu0 %v181
    %v383 = vpop.f32.mrf.mxu0
    %v384 = vadd.f32 0.0, %v383
    %v385 = vpop.f32.mrf.mxu0
    %v386 = vadd.f32 0.0, %v385
    %387 = vmatmul.bf16.gmra.mxu0 %v183
    %v388 = vpop.f32.mrf.mxu0
    %v389 = vadd.f32 0.0, %v388
    %v390 = vpop.f32.mrf.mxu0
    %v391 = vadd.f32 0.0, %v390
    %392 = vmatmul.bf16.gmra.mxu0 %v185
    %v393 = vpop.f32.mrf.mxu0
    %v394 = vadd.f32 0.0, %v393
    %v395 = vpop.f32.mrf.mxu0
    %v396 = vadd.f32 0.0, %v395
    %397 = vmatmul.bf16.gmra.mxu0 %v187
    %v398 = vpop.f32.mrf.mxu0
    %v399 = vadd.f32 0.0, %v398
    %v400 = vpop.f32.mrf.mxu0
    %v401 = vadd.f32 0.0, %v400
    %402 = vmatmul.bf16.gmra.mxu0 %v189
    %v403 = vpop.f32.mrf.mxu0
    %v404 = vadd.f32 0.0, %v403
    %v405 = vpop.f32.mrf.mxu0
    %v406 = vadd.f32 0.0, %v405
    %407 = vmatmul.bf16.gmra.mxu0 %v191
    %v408 = vpop.f32.mrf.mxu0
    %v409 = vadd.f32 0.0, %v408
    %v410 = vpop.f32.mrf.mxu0
    %v411 = vadd.f32 0.0, %v410
    %412 = vmatmul.bf16.gmra.mxu0 %v193
    %v413 = vpop.f32.mrf.mxu0
    %v414 = vadd.f32 0.0, %v413
    %v415 = vpop.f32.mrf.mxu0
    %v416 = vadd.f32 0.0, %v415
    %417 = vmatmul.bf16.gmra.mxu0 %v195
    %v418 = vpop.f32.mrf.mxu0
    %v419 = vadd.f32 0.0, %v418
    %v420 = vpop.f32.mrf.mxu0
    %v421 = vadd.f32 0.0, %v420
    %422 = vdwg.mxu0
    %423 = vmatpush.bf16.msra.mxu0 0
    %424 = vmatpush.bf16.msra.mxu0 0
    %425 = vmatpush.bf16.msra.mxu0 0
    %426 = vmatpush.bf16.msra.mxu0 0
    %427 = vmatpush.bf16.msra.mxu0 %v272
    %428 = vmatpush.bf16.msra.mxu0 %v271
    %429 = vmatpush.bf16.msra.mxu0 %v270
    %430 = vmatpush.bf16.msra.mxu0 %v269
    %431 = vmatmul.bf16.gmra.mxu0 %v287
    %v432 = vpop.f32.mrf.mxu0
    %v433 = vadd.f32 %v344, %v432
    %v434 = vpop.f32.mrf.mxu0
    %v435 = vadd.f32 %v346, %v434
    %436 = vmatmul.bf16.gmra.mxu0 %v290
    %v437 = vpop.f32.mrf.mxu0
    %v438 = vadd.f32 %v349, %v437
    %v439 = vpop.f32.mrf.mxu0
    %v440 = vadd.f32 %v351, %v439
    %441 = vmatmul.bf16.gmra.mxu0 %v293
    %v442 = vpop.f32.mrf.mxu0
    %v443 = vadd.f32 %v354, %v442
    %v444 = vpop.f32.mrf.mxu0
    %v445 = vadd.f32 %v356, %v444
    %446 = vmatmul.bf16.gmra.mxu0 %v296
    %v447 = vpop.f32.mrf.mxu0
    %v448 = vadd.f32 %v359, %v447
    %v449 = vpop.f32.mrf.mxu0
    %v450 = vadd.f32 %v361, %v449
    %451 = vmatmul.bf16.gmra.mxu0 %v299
    %v452 = vpop.f32.mrf.mxu0
    %v453 = vadd.f32 %v364, %v452
    %v454 = vpop.f32.mrf.mxu0
    %v455 = vadd.f32 %v366, %v454
    %456 = vmatmul.bf16.gmra.mxu0 %v302
    %v457 = vpop.f32.mrf.mxu0
    %v458 = vadd.f32 %v369, %v457
    %v459 = vpop.f32.mrf.mxu0
    %v460 = vadd.f32 %v371, %v459
    %461 = vmatmul.bf16.gmra.mxu0 %v305
    %v462 = vpop.f32.mrf.mxu0
    %v463 = vadd.f32 %v374, %v462
    %v464 = vpop.f32.mrf.mxu0
    %v465 = vadd.f32 %v376, %v464
    %466 = vmatmul.bf16.gmra.mxu0 %v308
    %v467 = vpop.f32.mrf.mxu0
    %v468 = vadd.f32 %v379, %v467
    %v469 = vpop.f32.mrf.mxu0
    %v470 = vadd.f32 %v381, %v469
    %471 = vmatmul.bf16.gmra.mxu0 %v311
    %v472 = vpop.f32.mrf.mxu0
    %v473 = vadd.f32 %v384, %v472
    %v474 = vpop.f32.mrf.mxu0
    %v475 = vadd.f32 %v386, %v474
    %476 = vmatmul.bf16.gmra.mxu0 %v314
    %v477 = vpop.f32.mrf.mxu0
    %v478 = vadd.f32 %v389, %v477
    %v479 = vpop.f32.mrf.mxu0
    %v480 = vadd.f32 %v391, %v479
    %481 = vmatmul.bf16.gmra.mxu0 %v317
    %v482 = vpop.f32.mrf.mxu0
    %v483 = vadd.f32 %v394, %v482
    %v484 = vpop.f32.mrf.mxu0
    %v485 = vadd.f32 %v396, %v484
    %486 = vmatmul.bf16.gmra.mxu0 %v320
    %v487 = vpop.f32.mrf.mxu0
    %v488 = vadd.f32 %v399, %v487
    %v489 = vpop.f32.mrf.mxu0
    %v490 = vadd.f32 %v401, %v489
    %491 = vmatmul.bf16.gmra.mxu0 %v323
    %v492 = vpop.f32.mrf.mxu0
    %v493 = vadd.f32 %v404, %v492
    %v494 = vpop.f32.mrf.mxu0
    %v495 = vadd.f32 %v406, %v494
    %496 = vmatmul.bf16.gmra.mxu0 %v326
    %v497 = vpop.f32.mrf.mxu0
    %v498 = vadd.f32 %v409, %v497
    %v499 = vpop.f32.mrf.mxu0
    %v500 = vadd.f32 %v411, %v499
    %501 = vmatmul.bf16.gmra.mxu0 %v329
    %v502 = vpop.f32.mrf.mxu0
    %v503 = vadd.f32 %v414, %v502
    %v504 = vpop.f32.mrf.mxu0
    %v505 = vadd.f32 %v416, %v504
    %506 = vmatmul.bf16.gmra.mxu0 %v332
    %v507 = vpop.f32.mrf.mxu0
    %v508 = vadd.f32 %v419, %v507
    %v509 = vpop.f32.mrf.mxu0
    %v510 = vadd.f32 %v421, %v509
    %511 = vdwg.mxu0
    %v512 = vmax.f32 %v433, 0.0
    %v513 = vmax.f32 %v435, 0.0
    %v514 = vmax.f32 %v438, 0.0
    %v515 = vmax.f32 %v440, 0.0
    %v516 = vmax.f32 %v443, 0.0
    %v517 = vmax.f32 %v445, 0.0
    %v518 = vmax.f32 %v448, 0.0
    %v519 = vmax.f32 %v450, 0.0
    %v520 = vmax.f32 %v453, 0.0
    %v521 = vmax.f32 %v455, 0.0
    %v522 = vmax.f32 %v458, 0.0
    %v523 = vmax.f32 %v460, 0.0
    %v524 = vmax.f32 %v463, 0.0
    %v525 = vmax.f32 %v465, 0.0
    %v526 = vmax.f32 %v468, 0.0
    %v527 = vmax.f32 %v470, 0.0
    %v528 = vmax.f32 %v473, 0.0
    %v529 = vmax.f32 %v475, 0.0
    %v530 = vmax.f32 %v478, 0.0
    %v531 = vmax.f32 %v480, 0.0
    %v532 = vmax.f32 %v483, 0.0
    %v533 = vmax.f32 %v485, 0.0
    %v534 = vmax.f32 %v488, 0.0
    %v535 = vmax.f32 %v490, 0.0
    %v536 = vmax.f32 %v493, 0.0
    %v537 = vmax.f32 %v495, 0.0
    %v538 = vmax.f32 %v498, 0.0
    %v539 = vmax.f32 %v500, 0.0
    %v540 = vmax.f32 %v503, 0.0
    %v541 = vmax.f32 %v505, 0.0
    %v542 = vmax.f32 %v508, 0.0
    %v543 = vmax.f32 %v510, 0.0
    %vm544 = vcmp.ne.f32.partialorder %v433, %v433
    %vm545 = vcmp.ne.f32.partialorder %v435, %v435
    %vm546 = vcmp.ne.f32.partialorder %v438, %v438
    %vm547 = vcmp.ne.f32.partialorder %v440, %v440
    %vm548 = vcmp.ne.f32.partialorder %v443, %v443
    %vm549 = vcmp.ne.f32.partialorder %v445, %v445
    %vm550 = vcmp.ne.f32.partialorder %v448, %v448
    %vm551 = vcmp.ne.f32.partialorder %v450, %v450
    %vm552 = vcmp.ne.f32.partialorder %v453, %v453
    %vm553 = vcmp.ne.f32.partialorder %v455, %v455
    %vm554 = vcmp.ne.f32.partialorder %v458, %v458
    %vm555 = vcmp.ne.f32.partialorder %v460, %v460
    %vm556 = vcmp.ne.f32.partialorder %v463, %v463
    %vm557 = vcmp.ne.f32.partialorder %v465, %v465
    %vm558 = vcmp.ne.f32.partialorder %v468, %v468
    %vm559 = vcmp.ne.f32.partialorder %v470, %v470
    %vm560 = vcmp.ne.f32.partialorder %v473, %v473
    %vm561 = vcmp.ne.f32.partialorder %v475, %v475
    %vm562 = vcmp.ne.f32.partialorder %v478, %v478
    %vm563 = vcmp.ne.f32.partialorder %v480, %v480
    %vm564 = vcmp.ne.f32.partialorder %v483, %v483
    %vm565 = vcmp.ne.f32.partialorder %v485, %v485
    %vm566 = vcmp.ne.f32.partialorder %v488, %v488
    %vm567 = vcmp.ne.f32.partialorder %v490, %v490
    %vm568 = vcmp.ne.f32.partialorder %v493, %v493
    %vm569 = vcmp.ne.f32.partialorder %v495, %v495
    %vm570 = vcmp.ne.f32.partialorder %v498, %v498
    %vm571 = vcmp.ne.f32.partialorder %v500, %v500
    %vm572 = vcmp.ne.f32.partialorder %v503, %v503
    %vm573 = vcmp.ne.f32.partialorder %v505, %v505
    %vm574 = vcmp.ne.f32.partialorder %v508, %v508
    %vm575 = vcmp.ne.f32.partialorder %v510, %v510
    %v576 = vadd.f32 %v433, 0.0
    %v577 = vadd.f32 %v435, 0.0
    %v578 = vadd.f32 %v438, 0.0
    %v579 = vadd.f32 %v440, 0.0
    %v580 = vadd.f32 %v443, 0.0
    %v581 = vadd.f32 %v445, 0.0
    %v582 = vadd.f32 %v448, 0.0
    %v583 = vadd.f32 %v450, 0.0
    %v584 = vadd.f32 %v453, 0.0
    %v585 = vadd.f32 %v455, 0.0
    %v586 = vadd.f32 %v458, 0.0
    %v587 = vadd.f32 %v460, 0.0
    %v588 = vadd.f32 %v463, 0.0
    %v589 = vadd.f32 %v465, 0.0
    %v590 = vadd.f32 %v468, 0.0
    %v591 = vadd.f32 %v470, 0.0
    %v592 = vadd.f32 %v473, 0.0
    %v593 = vadd.f32 %v475, 0.0
    %v594 = vadd.f32 %v478, 0.0
    %v595 = vadd.f32 %v480, 0.0
    %v596 = vadd.f32 %v483, 0.0
    %v597 = vadd.f32 %v485, 0.0
    %v598 = vadd.f32 %v488, 0.0
    %v599 = vadd.f32 %v490, 0.0
    %v600 = vadd.f32 %v493, 0.0
    %v601 = vadd.f32 %v495, 0.0
    %v602 = vadd.f32 %v498, 0.0
    %v603 = vadd.f32 %v500, 0.0
    %v604 = vadd.f32 %v503, 0.0
    %v605 = vadd.f32 %v505, 0.0
    %v606 = vadd.f32 %v508, 0.0
    %v607 = vadd.f32 %v510, 0.0
    %v608 = vand.u32 2147483647, %v433
    %v609 = vand.u32 2147483647, %v435
    %v610 = vand.u32 2147483647, %v438
    %v611 = vand.u32 2147483647, %v440
    %v612 = vand.u32 2147483647, %v443
    %v613 = vand.u32 2147483647, %v445
    %v614 = vand.u32 2147483647, %v448
    %v615 = vand.u32 2147483647, %v450
    %v616 = vand.u32 2147483647, %v453
    %v617 = vand.u32 2147483647, %v455
    %v618 = vand.u32 2147483647, %v458
    %v619 = vand.u32 2147483647, %v460
    %v620 = vand.u32 2147483647, %v463
    %v621 = vand.u32 2147483647, %v465
    %v622 = vand.u32 2147483647, %v468
    %v623 = vand.u32 2147483647, %v470
    %v624 = vand.u32 2147483647, %v473
    %v625 = vand.u32 2147483647, %v475
    %v626 = vand.u32 2147483647, %v478
    %v627 = vand.u32 2147483647, %v480
    %v628 = vand.u32 2147483647, %v483
    %v629 = vand.u32 2147483647, %v485
    %v630 = vand.u32 2147483647, %v488
    %v631 = vand.u32 2147483647, %v490
    %v632 = vand.u32 2147483647, %v493
    %v633 = vand.u32 2147483647, %v495
    %v634 = vand.u32 2147483647, %v498
    %v635 = vand.u32 2147483647, %v500
    %v636 = vand.u32 2147483647, %v503
    %v637 = vand.u32 2147483647, %v505
    %v638 = vand.u32 2147483647, %v508
    %v639 = vand.u32 2147483647, %v510
    %v640 = vsub.f32 0.0, %v608
    %v641 = vsub.f32 0.0, %v609
    %v642 = vsub.f32 0.0, %v610
    %v643 = vsub.f32 0.0, %v611
    %v644 = vsub.f32 0.0, %v612
    %v645 = vsub.f32 0.0, %v613
    %v646 = vsub.f32 0.0, %v614
    %v647 = vsub.f32 0.0, %v615
    %v648 = vsub.f32 0.0, %v616
    %v649 = vsub.f32 0.0, %v617
    %v650 = vsub.f32 0.0, %v618
    %v651 = vsub.f32 0.0, %v619
    %v652 = vsub.f32 0.0, %v620
    %v653 = vsub.f32 0.0, %v621
    %v654 = vsub.f32 0.0, %v622
    %v655 = vsub.f32 0.0, %v623
    %v656 = vsub.f32 0.0, %v624
    %v657 = vsub.f32 0.0, %v625
    %v658 = vsub.f32 0.0, %v626
    %v659 = vsub.f32 0.0, %v627
    %v660 = vsub.f32 0.0, %v628
    %v661 = vsub.f32 0.0, %v629
    %v662 = vsub.f32 0.0, %v630
    %v663 = vsub.f32 0.0, %v631
    %v664 = vsub.f32 0.0, %v632
    %v665 = vsub.f32 0.0, %v633
    %v666 = vsub.f32 0.0, %v634
    %v667 = vsub.f32 0.0, %v635
    %v668 = vsub.f32 0.0, %v636
    %v669 = vsub.f32 0.0, %v637
    %v670 = vsub.f32 0.0, %v638
    %v671 = vsub.f32 0.0, %v639
    %v672 = vmul.f32 %v640, 1.442695
    %v673 = vpow.pop %v672
    %v674 = vmul.f32 %v641, 1.442695
    %v675 = vpow.pop %v674
    %v676 = vmul.f32 %v642, 1.442695
    %v677 = vpow.pop %v676
    %v678 = vmul.f32 %v643, 1.442695
    %v679 = vpow.pop %v678
    %v680 = vmul.f32 %v644, 1.442695
    %v681 = vpow.pop %v680
    %v682 = vmul.f32 %v645, 1.442695
    %v683 = vpow.pop %v682
    %v684 = vmul.f32 %v646, 1.442695
    %v685 = vpow.pop %v684
    %v686 = vmul.f32 %v647, 1.442695
    %v687 = vpow.pop %v686
    %v688 = vmul.f32 %v648, 1.442695
    %v689 = vpow.pop %v688
    %v690 = vmul.f32 %v649, 1.442695
    %v691 = vpow.pop %v690
    %v692 = vmul.f32 %v650, 1.442695
    %v693 = vpow.pop %v692
    %v694 = vmul.f32 %v651, 1.442695
    %v695 = vpow.pop %v694
    %v696 = vmul.f32 %v652, 1.442695
    %v697 = vpow.pop %v696
    %v698 = vmul.f32 %v653, 1.442695
    %v699 = vpow.pop %v698
    %v700 = vmul.f32 %v654, 1.442695
    %v701 = vpow.pop %v700
    %v702 = vmul.f32 %v655, 1.442695
    %v703 = vpow.pop %v702
    %v704 = vmul.f32 %v656, 1.442695
    %v705 = vpow.pop %v704
    %v706 = vmul.f32 %v657, 1.442695
    %v707 = vpow.pop %v706
    %v708 = vmul.f32 %v658, 1.442695
    %v709 = vpow.pop %v708
    %v710 = vmul.f32 %v659, 1.442695
    %v711 = vpow.pop %v710
    %v712 = vmul.f32 %v660, 1.442695
    %v713 = vpow.pop %v712
    %v714 = vmul.f32 %v661, 1.442695
    %v715 = vpow.pop %v714
    %v716 = vmul.f32 %v662, 1.442695
    %v717 = vpow.pop %v716
    %v718 = vmul.f32 %v663, 1.442695
    %v719 = vpow.pop %v718
    %v720 = vmul.f32 %v664, 1.442695
    %v721 = vpow.pop %v720
    %v722 = vmul.f32 %v665, 1.442695
    %v723 = vpow.pop %v722
    %v724 = vmul.f32 %v666, 1.442695
    %v725 = vpow.pop %v724
    %v726 = vmul.f32 %v667, 1.442695
    %v727 = vpow.pop %v726
    %v728 = vmul.f32 %v668, 1.442695
    %v729 = vpow.pop %v728
    %v730 = vmul.f32 %v669, 1.442695
    %v731 = vpow.pop %v730
    %v732 = vmul.f32 %v670, 1.442695
    %v733 = vpow.pop %v732
    %v734 = vmul.f32 %v671, 1.442695
    %v735 = vpow.pop %v734
    %v736 = vadd.f32 %v673, 1.0
    %v737 = vlog2.pop %v736
    %v738 = vmul.f32 %v737, 0.6931472
    %v739 = vmul.f32 -0.5, %v673
    %v740 = vadd.f32 %v739, 1.0
    %v741 = vmul.f32 %v740, %v673
    %v742 = vand.u32 2147483647, %v673
    %vm743 = vcmp.lt.f32.partialorder %v742, 0.0004427343
    %v744 = vsel %vm743, %v741, %v738
    %v745 = vadd.f32 %v675, 1.0
    %v746 = vlog2.pop %v745
    %v747 = vmul.f32 %v746, 0.6931472
    %v748 = vmul.f32 -0.5, %v675
    %v749 = vadd.f32 %v748, 1.0
    %v750 = vmul.f32 %v749, %v675
    %v751 = vand.u32 2147483647, %v675
    %vm752 = vcmp.lt.f32.partialorder %v751, 0.0004427343
    %v753 = vsel %vm752, %v750, %v747
    %v754 = vadd.f32 %v677, 1.0
    %v755 = vlog2.pop %v754
    %v756 = vmul.f32 %v755, 0.6931472
    %v757 = vmul.f32 -0.5, %v677
    %v758 = vadd.f32 %v757, 1.0
    %v759 = vmul.f32 %v758, %v677
    %v760 = vand.u32 2147483647, %v677
    %vm761 = vcmp.lt.f32.partialorder %v760, 0.0004427343
    %v762 = vsel %vm761, %v759, %v756
    %v763 = vadd.f32 %v679, 1.0
    %v764 = vlog2.pop %v763
    %v765 = vmul.f32 %v764, 0.6931472
    %v766 = vmul.f32 -0.5, %v679
    %v767 = vadd.f32 %v766, 1.0
    %v768 = vmul.f32 %v767, %v679
    %v769 = vand.u32 2147483647, %v679
    %vm770 = vcmp.lt.f32.partialorder %v769, 0.0004427343
    %v771 = vsel %vm770, %v768, %v765
    %v772 = vadd.f32 %v681, 1.0
    %v773 = vlog2.pop %v772
    %v774 = vmul.f32 %v773, 0.6931472
    %v775 = vmul.f32 -0.5, %v681
    %v776 = vadd.f32 %v775, 1.0
    %v777 = vmul.f32 %v776, %v681
    %v778 = vand.u32 2147483647, %v681
    %vm779 = vcmp.lt.f32.partialorder %v778, 0.0004427343
    %v780 = vsel %vm779, %v777, %v774
    %v781 = vadd.f32 %v683, 1.0
    %v782 = vlog2.pop %v781
    %v783 = vmul.f32 %v782, 0.6931472
    %v784 = vmul.f32 -0.5, %v683
    %v785 = vadd.f32 %v784, 1.0
    %v786 = vmul.f32 %v785, %v683
    %v787 = vand.u32 2147483647, %v683
    %vm788 = vcmp.lt.f32.partialorder %v787, 0.0004427343
    %v789 = vsel %vm788, %v786, %v783
    %v790 = vadd.f32 %v685, 1.0
    %v791 = vlog2.pop %v790
    %v792 = vmul.f32 %v791, 0.6931472
    %v793 = vmul.f32 -0.5, %v685
    %v794 = vadd.f32 %v793, 1.0
    %v795 = vmul.f32 %v794, %v685
    %v796 = vand.u32 2147483647, %v685
    %vm797 = vcmp.lt.f32.partialorder %v796, 0.0004427343
    %v798 = vsel %vm797, %v795, %v792
    %v799 = vadd.f32 %v687, 1.0
    %v800 = vlog2.pop %v799
    %v801 = vmul.f32 %v800, 0.6931472
    %v802 = vmul.f32 -0.5, %v687
    %v803 = vadd.f32 %v802, 1.0
    %v804 = vmul.f32 %v803, %v687
    %v805 = vand.u32 2147483647, %v687
    %vm806 = vcmp.lt.f32.partialorder %v805, 0.0004427343
    %v807 = vsel %vm806, %v804, %v801
    %v808 = vadd.f32 %v689, 1.0
    %v809 = vlog2.pop %v808
    %v810 = vmul.f32 %v809, 0.6931472
    %v811 = vmul.f32 -0.5, %v689
    %v812 = vadd.f32 %v811, 1.0
    %v813 = vmul.f32 %v812, %v689
    %v814 = vand.u32 2147483647, %v689
    %vm815 = vcmp.lt.f32.partialorder %v814, 0.0004427343
    %v816 = vsel %vm815, %v813, %v810
    %v817 = vadd.f32 %v691, 1.0
    %v818 = vlog2.pop %v817
    %v819 = vmul.f32 %v818, 0.6931472
    %v820 = vmul.f32 -0.5, %v691
    %v821 = vadd.f32 %v820, 1.0
    %v822 = vmul.f32 %v821, %v691
    %v823 = vand.u32 2147483647, %v691
    %vm824 = vcmp.lt.f32.partialorder %v823, 0.0004427343
    %v825 = vsel %vm824, %v822, %v819
    %v826 = vadd.f32 %v693, 1.0
    %v827 = vlog2.pop %v826
    %v828 = vmul.f32 %v827, 0.6931472
    %v829 = vmul.f32 -0.5, %v693
    %v830 = vadd.f32 %v829, 1.0
    %v831 = vmul.f32 %v830, %v693
    %v832 = vand.u32 2147483647, %v693
    %vm833 = vcmp.lt.f32.partialorder %v832, 0.0004427343
    %v834 = vsel %vm833, %v831, %v828
    %v835 = vadd.f32 %v695, 1.0
    %v836 = vlog2.pop %v835
    %v837 = vmul.f32 %v836, 0.6931472
    %v838 = vmul.f32 -0.5, %v695
    %v839 = vadd.f32 %v838, 1.0
    %v840 = vmul.f32 %v839, %v695
    %v841 = vand.u32 2147483647, %v695
    %vm842 = vcmp.lt.f32.partialorder %v841, 0.0004427343
    %v843 = vsel %vm842, %v840, %v837
    %v844 = vadd.f32 %v697, 1.0
    %v845 = vlog2.pop %v844
    %v846 = vmul.f32 %v845, 0.6931472
    %v847 = vmul.f32 -0.5, %v697
    %v848 = vadd.f32 %v847, 1.0
    %v849 = vmul.f32 %v848, %v697
    %v850 = vand.u32 2147483647, %v697
    %vm851 = vcmp.lt.f32.partialorder %v850, 0.0004427343
    %v852 = vsel %vm851, %v849, %v846
    %v853 = vadd.f32 %v699, 1.0
    %v854 = vlog2.pop %v853
    %v855 = vmul.f32 %v854, 0.6931472
    %v856 = vmul.f32 -0.5, %v699
    %v857 = vadd.f32 %v856, 1.0
    %v858 = vmul.f32 %v857, %v699
    %v859 = vand.u32 2147483647, %v699
    %vm860 = vcmp.lt.f32.partialorder %v859, 0.0004427343
    %v861 = vsel %vm860, %v858, %v855
    %v862 = vadd.f32 %v701, 1.0
    %v863 = vlog2.pop %v862
    %v864 = vmul.f32 %v863, 0.6931472
    %v865 = vmul.f32 -0.5, %v701
    %v866 = vadd.f32 %v865, 1.0
    %v867 = vmul.f32 %v866, %v701
    %v868 = vand.u32 2147483647, %v701
    %vm869 = vcmp.lt.f32.partialorder %v868, 0.0004427343
    %v870 = vsel %vm869, %v867, %v864
    %v871 = vadd.f32 %v703, 1.0
    %v872 = vlog2.pop %v871
    %v873 = vmul.f32 %v872, 0.6931472
    %v874 = vmul.f32 -0.5, %v703
    %v875 = vadd.f32 %v874, 1.0
    %v876 = vmul.f32 %v875, %v703
    %v877 = vand.u32 2147483647, %v703
    %vm878 = vcmp.lt.f32.partialorder %v877, 0.0004427343
    %v879 = vsel %vm878, %v876, %v873
    %v880 = vadd.f32 %v705, 1.0
    %v881 = vlog2.pop %v880
    %v882 = vmul.f32 %v881, 0.6931472
    %v883 = vmul.f32 -0.5, %v705
    %v884 = vadd.f32 %v883, 1.0
    %v885 = vmul.f32 %v884, %v705
    %v886 = vand.u32 2147483647, %v705
    %vm887 = vcmp.lt.f32.partialorder %v886, 0.0004427343
    %v888 = vsel %vm887, %v885, %v882
    %v889 = vadd.f32 %v707, 1.0
    %v890 = vlog2.pop %v889
    %v891 = vmul.f32 %v890, 0.6931472
    %v892 = vmul.f32 -0.5, %v707
    %v893 = vadd.f32 %v892, 1.0
    %v894 = vmul.f32 %v893, %v707
    %v895 = vand.u32 2147483647, %v707
    %vm896 = vcmp.lt.f32.partialorder %v895, 0.0004427343
    %v897 = vsel %vm896, %v894, %v891
    %v898 = vadd.f32 %v709, 1.0
    %v899 = vlog2.pop %v898
    %v900 = vmul.f32 %v899, 0.6931472
    %v901 = vmul.f32 -0.5, %v709
    %v902 = vadd.f32 %v901, 1.0
    %v903 = vmul.f32 %v902, %v709
    %v904 = vand.u32 2147483647, %v709
    %vm905 = vcmp.lt.f32.partialorder %v904, 0.0004427343
    %v906 = vsel %vm905, %v903, %v900
    %v907 = vadd.f32 %v711, 1.0
    %v908 = vlog2.pop %v907
    %v909 = vmul.f32 %v908, 0.6931472
    %v910 = vmul.f32 -0.5, %v711
    %v911 = vadd.f32 %v910, 1.0
    %v912 = vmul.f32 %v911, %v711
    %v913 = vand.u32 2147483647, %v711
    %vm914 = vcmp.lt.f32.partialorder %v913, 0.0004427343
    %v915 = vsel %vm914, %v912, %v909
    %v916 = vadd.f32 %v713, 1.0
    %v917 = vlog2.pop %v916
    %v918 = vmul.f32 %v917, 0.6931472
    %v919 = vmul.f32 -0.5, %v713
    %v920 = vadd.f32 %v919, 1.0
    %v921 = vmul.f32 %v920, %v713
    %v922 = vand.u32 2147483647, %v713
    %vm923 = vcmp.lt.f32.partialorder %v922, 0.0004427343
    %v924 = vsel %vm923, %v921, %v918
    %v925 = vadd.f32 %v715, 1.0
    %v926 = vlog2.pop %v925
    %v927 = vmul.f32 %v926, 0.6931472
    %v928 = vmul.f32 -0.5, %v715
    %v929 = vadd.f32 %v928, 1.0
    %v930 = vmul.f32 %v929, %v715
    %v931 = vand.u32 2147483647, %v715
    %vm932 = vcmp.lt.f32.partialorder %v931, 0.0004427343
    %v933 = vsel %vm932, %v930, %v927
    %v934 = vadd.f32 %v717, 1.0
    %v935 = vlog2.pop %v934
    %v936 = vmul.f32 %v935, 0.6931472
    %v937 = vmul.f32 -0.5, %v717
    %v938 = vadd.f32 %v937, 1.0
    %v939 = vmul.f32 %v938, %v717
    %v940 = vand.u32 2147483647, %v717
    %vm941 = vcmp.lt.f32.partialorder %v940, 0.0004427343
    %v942 = vsel %vm941, %v939, %v936
    %v943 = vadd.f32 %v719, 1.0
    %v944 = vlog2.pop %v943
    %v945 = vmul.f32 %v944, 0.6931472
    %v946 = vmul.f32 -0.5, %v719
    %v947 = vadd.f32 %v946, 1.0
    %v948 = vmul.f32 %v947, %v719
    %v949 = vand.u32 2147483647, %v719
    %vm950 = vcmp.lt.f32.partialorder %v949, 0.0004427343
    %v951 = vsel %vm950, %v948, %v945
    %v952 = vadd.f32 %v721, 1.0
    %v953 = vlog2.pop %v952
    %v954 = vmul.f32 %v953, 0.6931472
    %v955 = vmul.f32 -0.5, %v721
    %v956 = vadd.f32 %v955, 1.0
    %v957 = vmul.f32 %v956, %v721
    %v958 = vand.u32 2147483647, %v721
    %vm959 = vcmp.lt.f32.partialorder %v958, 0.0004427343
    %v960 = vsel %vm959, %v957, %v954
    %v961 = vadd.f32 %v723, 1.0
    %v962 = vlog2.pop %v961
    %v963 = vmul.f32 %v962, 0.6931472
    %v964 = vmul.f32 -0.5, %v723
    %v965 = vadd.f32 %v964, 1.0
    %v966 = vmul.f32 %v965, %v723
    %v967 = vand.u32 2147483647, %v723
    %vm968 = vcmp.lt.f32.partialorder %v967, 0.0004427343
    %v969 = vsel %vm968, %v966, %v963
    %v970 = vadd.f32 %v725, 1.0
    %v971 = vlog2.pop %v970
    %v972 = vmul.f32 %v971, 0.6931472
    %v973 = vmul.f32 -0.5, %v725
    %v974 = vadd.f32 %v973, 1.0
    %v975 = vmul.f32 %v974, %v725
    %v976 = vand.u32 2147483647, %v725
    %vm977 = vcmp.lt.f32.partialorder %v976, 0.0004427343
    %v978 = vsel %vm977, %v975, %v972
    %v979 = vadd.f32 %v727, 1.0
    %v980 = vlog2.pop %v979
    %v981 = vmul.f32 %v980, 0.6931472
    %v982 = vmul.f32 -0.5, %v727
    %v983 = vadd.f32 %v982, 1.0
    %v984 = vmul.f32 %v983, %v727
    %v985 = vand.u32 2147483647, %v727
    %vm986 = vcmp.lt.f32.partialorder %v985, 0.0004427343
    %v987 = vsel %vm986, %v984, %v981
    %v988 = vadd.f32 %v729, 1.0
    %v989 = vlog2.pop %v988
    %v990 = vmul.f32 %v989, 0.6931472
    %v991 = vmul.f32 -0.5, %v729
    %v992 = vadd.f32 %v991, 1.0
    %v993 = vmul.f32 %v992, %v729
    %v994 = vand.u32 2147483647, %v729
    %vm995 = vcmp.lt.f32.partialorder %v994, 0.0004427343
    %v996 = vsel %vm995, %v993, %v990
    %v997 = vadd.f32 %v731, 1.0
    %v998 = vlog2.pop %v997
    %v999 = vmul.f32 %v998, 0.6931472
    %v1000 = vmul.f32 -0.5, %v731
    %v1001 = vadd.f32 %v1000, 1.0
    %v1002 = vmul.f32 %v1001, %v731
    %v1003 = vand.u32 2147483647, %v731
    %vm1004 = vcmp.lt.f32.partialorder %v1003, 0.0004427343
    %v1005 = vsel %vm1004, %v1002, %v999
    %v1006 = vadd.f32 %v733, 1.0
    %v1007 = vlog2.pop %v1006
    %v1008 = vmul.f32 %v1007, 0.6931472
    %v1009 = vmul.f32 -0.5, %v733
    %v1010 = vadd.f32 %v1009, 1.0
    %v1011 = vmul.f32 %v1010, %v733
    %v1012 = vand.u32 2147483647, %v733
    %vm1013 = vcmp.lt.f32.partialorder %v1012, 0.0004427343
    %v1014 = vsel %vm1013, %v1011, %v1008
    %v1015 = vadd.f32 %v735, 1.0
    %v1016 = vlog2.pop %v1015
    %v1017 = vmul.f32 %v1016, 0.6931472
    %v1018 = vmul.f32 -0.5, %v735
    %v1019 = vadd.f32 %v1018, 1.0
    %v1020 = vmul.f32 %v1019, %v735
    %v1021 = vand.u32 2147483647, %v735
    %vm1022 = vcmp.lt.f32.partialorder %v1021, 0.0004427343
    %v1023 = vsel %vm1022, %v1020, %v1017
    %v1024 = vadd.f32 %v512, %v744
    %v1025 = vadd.f32 %v513, %v753
    %v1026 = vadd.f32 %v514, %v762
    %v1027 = vadd.f32 %v515, %v771
    %v1028 = vadd.f32 %v516, %v780
    %v1029 = vadd.f32 %v517, %v789
    %v1030 = vadd.f32 %v518, %v798
    %v1031 = vadd.f32 %v519, %v807
    %v1032 = vadd.f32 %v520, %v816
    %v1033 = vadd.f32 %v521, %v825
    %v1034 = vadd.f32 %v522, %v834
    %v1035 = vadd.f32 %v523, %v843
    %v1036 = vadd.f32 %v524, %v852
    %v1037 = vadd.f32 %v525, %v861
    %v1038 = vadd.f32 %v526, %v870
    %v1039 = vadd.f32 %v527, %v879
    %v1040 = vadd.f32 %v528, %v888
    %v1041 = vadd.f32 %v529, %v897
    %v1042 = vadd.f32 %v530, %v906
    %v1043 = vadd.f32 %v531, %v915
    %v1044 = vadd.f32 %v532, %v924
    %v1045 = vadd.f32 %v533, %v933
    %v1046 = vadd.f32 %v534, %v942
    %v1047 = vadd.f32 %v535, %v951
    %v1048 = vadd.f32 %v536, %v960
    %v1049 = vadd.f32 %v537, %v969
    %v1050 = vadd.f32 %v538, %v978
    %v1051 = vadd.f32 %v539, %v987
    %v1052 = vadd.f32 %v540, %v996
    %v1053 = vadd.f32 %v541, %v1005
    %v1054 = vadd.f32 %v542, %v1014
    %v1055 = vadd.f32 %v543, %v1023
    %v1056 = vsel %vm544, %v576, %v1024
    %v1057 = vsel %vm545, %v577, %v1025
    %v1058 = vsel %vm546, %v578, %v1026
    %v1059 = vsel %vm547, %v579, %v1027
    %v1060 = vsel %vm548, %v580, %v1028
    %v1061 = vsel %vm549, %v581, %v1029
    %v1062 = vsel %vm550, %v582, %v1030
    %v1063 = vsel %vm551, %v583, %v1031
    %v1064 = vsel %vm552, %v584, %v1032
    %v1065 = vsel %vm553, %v585, %v1033
    %v1066 = vsel %vm554, %v586, %v1034
    %v1067 = vsel %vm555, %v587, %v1035
    %v1068 = vsel %vm556, %v588, %v1036
    %v1069 = vsel %vm557, %v589, %v1037
    %v1070 = vsel %vm558, %v590, %v1038
    %v1071 = vsel %vm559, %v591, %v1039
    %v1072 = vsel %vm560, %v592, %v1040
    %v1073 = vsel %vm561, %v593, %v1041
    %v1074 = vsel %vm562, %v594, %v1042
    %v1075 = vsel %vm563, %v595, %v1043
    %v1076 = vsel %vm564, %v596, %v1044
    %v1077 = vsel %vm565, %v597, %v1045
    %v1078 = vsel %vm566, %v598, %v1046
    %v1079 = vsel %vm567, %v599, %v1047
    %v1080 = vsel %vm568, %v600, %v1048
    %v1081 = vsel %vm569, %v601, %v1049
    %v1082 = vsel %vm570, %v602, %v1050
    %v1083 = vsel %vm571, %v603, %v1051
    %v1084 = vsel %vm572, %v604, %v1052
    %v1085 = vsel %vm573, %v605, %v1053
    %v1086 = vsel %vm574, %v606, %v1054
    %v1087 = vsel %vm575, %v607, %v1055
    %v1088 = vtanh.pop %v1056
    %v1089 = vtanh.pop %v1057
    %v1090 = vtanh.pop %v1058
    %v1091 = vtanh.pop %v1059
    %v1092 = vtanh.pop %v1060
    %v1093 = vtanh.pop %v1061
    %v1094 = vtanh.pop %v1062
    %v1095 = vtanh.pop %v1063
    %v1096 = vtanh.pop %v1064
    %v1097 = vtanh.pop %v1065
    %v1098 = vtanh.pop %v1066
    %v1099 = vtanh.pop %v1067
    %v1100 = vtanh.pop %v1068
    %v1101 = vtanh.pop %v1069
    %v1102 = vtanh.pop %v1070
    %v1103 = vtanh.pop %v1071
    %v1104 = vtanh.pop %v1072
    %v1105 = vtanh.pop %v1073
    %v1106 = vtanh.pop %v1074
    %v1107 = vtanh.pop %v1075
    %v1108 = vtanh.pop %v1076
    %v1109 = vtanh.pop %v1077
    %v1110 = vtanh.pop %v1078
    %v1111 = vtanh.pop %v1079
    %v1112 = vtanh.pop %v1080
    %v1113 = vtanh.pop %v1081
    %v1114 = vtanh.pop %v1082
    %v1115 = vtanh.pop %v1083
    %v1116 = vtanh.pop %v1084
    %v1117 = vtanh.pop %v1085
    %v1118 = vtanh.pop %v1086
    %v1119 = vtanh.pop %v1087
    %v1120 = vmul.f32 %v433, %v1088
    %v1121 = vmul.f32 %v435, %v1089
    %v1122 = vmul.f32 %v438, %v1090
    %v1123 = vmul.f32 %v440, %v1091
    %v1124 = vmul.f32 %v443, %v1092
    %v1125 = vmul.f32 %v445, %v1093
    %v1126 = vmul.f32 %v448, %v1094
    %v1127 = vmul.f32 %v450, %v1095
    %v1128 = vmul.f32 %v453, %v1096
    %v1129 = vmul.f32 %v455, %v1097
    %v1130 = vmul.f32 %v458, %v1098
    %v1131 = vmul.f32 %v460, %v1099
    %v1132 = vmul.f32 %v463, %v1100
    %v1133 = vmul.f32 %v465, %v1101
    %v1134 = vmul.f32 %v468, %v1102
    %v1135 = vmul.f32 %v470, %v1103
    %v1136 = vmul.f32 %v473, %v1104
    %v1137 = vmul.f32 %v475, %v1105
    %v1138 = vmul.f32 %v478, %v1106
    %v1139 = vmul.f32 %v480, %v1107
    %v1140 = vmul.f32 %v483, %v1108
    %v1141 = vmul.f32 %v485, %v1109
    %v1142 = vmul.f32 %v488, %v1110
    %v1143 = vmul.f32 %v490, %v1111
    %v1144 = vmul.f32 %v493, %v1112
    %v1145 = vmul.f32 %v495, %v1113
    %v1146 = vmul.f32 %v498, %v1114
    %v1147 = vmul.f32 %v500, %v1115
    %v1148 = vmul.f32 %v503, %v1116
    %v1149 = vmul.f32 %v505, %v1117
    %v1150 = vmul.f32 %v508, %v1118
    %v1151 = vmul.f32 %v510, %v1119
    %v1152 = vsel %vm285, %v433, %v1120
    %v1153 = vsel %vm285, %v435, %v1121
    %v1154 = vsel %vm285, %v438, %v1122
    %v1155 = vsel %vm285, %v440, %v1123
    %v1156 = vsel %vm285, %v443, %v1124
    %v1157 = vsel %vm285, %v445, %v1125
    %v1158 = vsel %vm285, %v448, %v1126
    %v1159 = vsel %vm285, %v450, %v1127
    %v1160 = vsel %vm285, %v453, %v1128
    %v1161 = vsel %vm285, %v455, %v1129
    %v1162 = vsel %vm285, %v458, %v1130
    %v1163 = vsel %vm285, %v460, %v1131
    %v1164 = vsel %vm285, %v463, %v1132
    %v1165 = vsel %vm285, %v465, %v1133
    %v1166 = vsel %vm285, %v468, %v1134
    %v1167 = vsel %vm285, %v470, %v1135
    %v1168 = vsel %vm285, %v473, %v1136
    %v1169 = vsel %vm285, %v475, %v1137
    %v1170 = vsel %vm285, %v478, %v1138
    %v1171 = vsel %vm285, %v480, %v1139
    %v1172 = vsel %vm285, %v483, %v1140
    %v1173 = vsel %vm285, %v485, %v1141
    %v1174 = vsel %vm285, %v488, %v1142
    %v1175 = vsel %vm285, %v490, %v1143
    %v1176 = vsel %vm285, %v493, %v1144
    %v1177 = vsel %vm285, %v495, %v1145
    %v1178 = vsel %vm285, %v498, %v1146
    %v1179 = vsel %vm285, %v500, %v1147
    %v1180 = vsel %vm285, %v503, %v1148
    %v1181 = vsel %vm285, %v505, %v1149
    %v1182 = vsel %vm285, %v508, %v1150
    %v1183 = vsel %vm285, %v510, %v1151
    %vm1184 = vcmask 556032
    %v1185 = vsel %vm1184, %v1152, 0.0
    %v1186 = vsel %vm1184, %v1153, 0.0
    %v1187 = vsel %vm1184, %v1154, 0.0
    %v1188 = vsel %vm1184, %v1155, 0.0
    %v1189 = vsel %vm1184, %v1156, 0.0
    %v1190 = vsel %vm1184, %v1157, 0.0
    %v1191 = vsel %vm1184, %v1158, 0.0
    %v1192 = vsel %vm1184, %v1159, 0.0
    %v1193 = vsel %vm1184, %v1160, 0.0
    %v1194 = vsel %vm1184, %v1161, 0.0
    %v1195 = vsel %vm1184, %v1162, 0.0
    %v1196 = vsel %vm1184, %v1163, 0.0
    %v1197 = vsel %vm1184, %v1164, 0.0
    %v1198 = vsel %vm1184, %v1165, 0.0
    %v1199 = vsel %vm1184, %v1166, 0.0
    %v1200 = vsel %vm1184, %v1167, 0.0
    %v1201 = vsel %vm1184, %v1168, 0.0
    %v1202 = vsel %vm1184, %v1169, 0.0
    %v1203 = vsel %vm1184, %v1170, 0.0
    %v1204 = vsel %vm1184, %v1171, 0.0
    %v1205 = vsel %vm1184, %v1172, 0.0
    %v1206 = vsel %vm1184, %v1173, 0.0
    %v1207 = vsel %vm1184, %v1174, 0.0
    %v1208 = vsel %vm1184, %v1175, 0.0
    %v1209 = vsel %vm1184, %v1176, 0.0
    %v1210 = vsel %vm1184, %v1177, 0.0
    %v1211 = vsel %vm1184, %v1178, 0.0
    %v1212 = vsel %vm1184, %v1179, 0.0
    %v1213 = vsel %vm1184, %v1180, 0.0
    %v1214 = vsel %vm1184, %v1181, 0.0
    %v1215 = vsel %vm1184, %v1182, 0.0
    %v1216 = vsel %vm1184, %v1183, 0.0
    %v1217 = vpack.c.bf16 %v1185, %v1185
    %v1218 = vpack.c.bf16 %v1186, %v1186
    %v1219 = vpack.c.bf16 %v1187, %v1187
    %v1220 = vpack.c.bf16 %v1188, %v1188
    %v1221 = vpack.c.bf16 %v1189, %v1189
    %v1222 = vpack.c.bf16 %v1190, %v1190
    %v1223 = vpack.c.bf16 %v1191, %v1191
    %v1224 = vpack.c.bf16 %v1192, %v1192
    %v1225 = vpack.c.bf16 %v1193, %v1193
    %v1226 = vpack.c.bf16 %v1194, %v1194
    %v1227 = vpack.c.bf16 %v1195, %v1195
    %v1228 = vpack.c.bf16 %v1196, %v1196
    %v1229 = vpack.c.bf16 %v1197, %v1197
    %v1230 = vpack.c.bf16 %v1198, %v1198
    %v1231 = vpack.c.bf16 %v1199, %v1199
    %v1232 = vpack.c.bf16 %v1200, %v1200
    %v1233 = vpack.c.bf16 %v1201, %v1201
    %v1234 = vpack.c.bf16 %v1202, %v1202
    %v1235 = vpack.c.bf16 %v1203, %v1203
    %v1236 = vpack.c.bf16 %v1204, %v1204
    %v1237 = vpack.c.bf16 %v1205, %v1205
    %v1238 = vpack.c.bf16 %v1206, %v1206
    %v1239 = vpack.c.bf16 %v1207, %v1207
    %v1240 = vpack.c.bf16 %v1208, %v1208
    %v1241 = vpack.c.bf16 %v1209, %v1209
    %v1242 = vpack.c.bf16 %v1210, %v1210
    %v1243 = vpack.c.bf16 %v1211, %v1211
    %v1244 = vpack.c.bf16 %v1212, %v1212
    %v1245 = vpack.c.bf16 %v1213, %v1213
    %v1246 = vpack.c.bf16 %v1214, %v1214
    %v1247 = vpack.c.bf16 %v1215, %v1215
    %v1248 = vpack.c.bf16 %v1216, %v1216
    %1249 = vst [vmem:[#allocation2] sm:$0xf] %v1217
    %1250 = vst [vmem:[#allocation2 + $0x4] sm:$0xf] %v1218
    %1251 = vst [vmem:[#allocation2 + $0x8] sm:$0xf] %v1219
    %1252 = vst [vmem:[#allocation2 + $0xc] sm:$0xf] %v1220
    %1253 = vst [vmem:[#allocation2 + $0x10] sm:$0xf] %v1221
    %1254 = vst [vmem:[#allocation2 + $0x14] sm:$0xf] %v1222
    %1255 = vst [vmem:[#allocation2 + $0x18] sm:$0xf] %v1223
    %1256 = vst [vmem:[#allocation2 + $0x1c] sm:$0xf] %v1224
    %1257 = vst [vmem:[#allocation2 + $0x20] sm:$0xf] %v1225
    %1258 = vst [vmem:[#allocation2 + $0x24] sm:$0xf] %v1226
    %1259 = vst [vmem:[#allocation2 + $0x28] sm:$0xf] %v1227
    %1260 = vst [vmem:[#allocation2 + $0x2c] sm:$0xf] %v1228
    %1261 = vst [vmem:[#allocation2 + $0x30] sm:$0xf] %v1229
    %1262 = vst [vmem:[#allocation2 + $0x34] sm:$0xf] %v1230
    %1263 = vst [vmem:[#allocation2 + $0x38] sm:$0xf] %v1231
    %1264 = vst [vmem:[#allocation2 + $0x3c] sm:$0xf] %v1232
    %1265 = vst [vmem:[#allocation2 + $0x40] sm:$0xf] %v1233
    %1266 = vst [vmem:[#allocation2 + $0x44] sm:$0xf] %v1234
    %1267 = vst [vmem:[#allocation2 + $0x48] sm:$0xf] %v1235
    %1268 = vst [vmem:[#allocation2 + $0x4c] sm:$0xf] %v1236
    %1269 = vst [vmem:[#allocation2 + $0x50] sm:$0xf] %v1237
    %1270 = vst [vmem:[#allocation2 + $0x54] sm:$0xf] %v1238
    %1271 = vst [vmem:[#allocation2 + $0x58] sm:$0xf] %v1239
    %1272 = vst [vmem:[#allocation2 + $0x5c] sm:$0xf] %v1240
    %1273 = vst [vmem:[#allocation2 + $0x60] sm:$0xf] %v1241
    %1274 = vst [vmem:[#allocation2 + $0x64] sm:$0xf] %v1242
    %1275 = vst [vmem:[#allocation2 + $0x68] sm:$0xf] %v1243
    %1276 = vst [vmem:[#allocation2 + $0x6c] sm:$0xf] %v1244
    %1277 = vst [vmem:[#allocation2 + $0x70] sm:$0xf] %v1245
    %1278 = vst [vmem:[#allocation2 + $0x74] sm:$0xf] %v1246
    %1279 = vst [vmem:[#allocation2 + $0x78] sm:$0xf] %v1247
    %1280 = vst [vmem:[#allocation2 + $0x7c] sm:$0xf] %v1248
    // Predicated region
    $region10: #{tpu_custom_call.1} parent=1 // pred_check
      _
    $region11: #{tpu_custom_call.1} parent=1 // pred_check_branch
      %1282 = sbr.rel (0) target = $region13
    $region12: #{tpu_custom_call.1} parent=1 // pred_region
      %1284 = vsyncadd [#allocation3], 0
      %s1285 = sshll.u32 [#allocation2], 4
      %s1286 = int_to_ptr.vmem [resolvable:$true] %s1285
      %s1287 = sshll.u32 %s2, 4
      %s1288 = int_to_ptr.hbm [resolvable:$true] %s1287
      %1293 = dma.vmem_to_hbm [thread:$0]  %s1286, 2048, %s1288, [#allocation3], 64, 64, 4
    $region13: #{tpu_custom_call.1} parent=1 // pred_fallthru
      _
    // Predicated region
    $region14: #{tpu_custom_call.1} parent=1 // pred_check
      _
    $region15: #{tpu_custom_call.1} parent=1 // pred_check_branch
      %1295 = sbr.rel (0) target = $region17
    $region16: #{tpu_custom_call.1} parent=1 // pred_region
      %1297 = dma.done [#allocation3], 2048
    $region17: #{tpu_custom_call.1} parent=1 // pred_fallthru
      _
    %1298 = vsyncpa [#allocation3], 1

</llo_original>
